<compile_context>
chip_gen: v5e
topology: v5e:2x2
jax: 0.10.0
libtpu: 0.0.40
codegen_flags: <defaults>
</compile_context>

<pallas_src>
import functools

import jax
import jax.numpy as jnp
from jax.experimental import pallas as pl
from jax.experimental.pallas import tpu as pltpu


def linearnet1_kernel(xt_ref, w1t_ref, b1_ref, wd_ref, bd_ref, out_ref, *, use_mxu):
    # xt_ref : (2, TB)   input, batch on the lane axis
    # w1t_ref: (H, 2)    first-layer weight (torch (out, in) layout)
    # b1_ref : (H, 1)
    # wd_ref : (1, H) if use_mxu else (H, 1)   -- precomputed w2[:,0] - w2[:,1]
    # bd_ref : (1, 1)                          -- precomputed b2[0] - b2[1]
    # out_ref: (2, TB)   softmax probabilities, classes on sublanes
    x = xt_ref[...]                                           # (2, TB)

    if use_mxu:
        # Layer 1 on the MXU (frees the 4 VALU slots; K=2 padding is cheap, MXU is idle).
        h = jnp.dot(w1t_ref[...], x, preferred_element_type=jnp.float32)     # (H, TB)
    else:
        # VPU broadcast-FMA path (benchmark option for v5e).
        h = w1t_ref[:, 0:1] * x[0:1, :] + w1t_ref[:, 1:2] * x[1:2, :]        # (H, TB)

    h = jnp.maximum(h + b1_ref[...], 0.0)                     # bias + ReLU on the VPU

    # Two-class head: softmax([l0, l1]) = [sigmoid(l0 - l1), 1 - sigmoid(l0 - l1)],
    # so only the logit difference matters -> one contraction over H.
    if use_mxu:
        d = jnp.dot(wd_ref[...], h, preferred_element_type=jnp.float32)      # (1, TB)
    else:
        d = jnp.sum(h * wd_ref[...], axis=0, keepdims=True)                  # (1, TB)
    d = d + bd_ref[...]

    # exp on the EUP; exact reciprocal keeps the 1e-5 accuracy check
    # (use approx=True when ~1e-3 accuracy suffices -> fully EUP, off the VALU slots).
    p0 = pl.reciprocal(1.0 + jnp.exp(-d), approx=False)       # (1, TB)
    out_ref[...] = jnp.concatenate([p0, 1.0 - p0], axis=0)    # (2, TB), lane-dense store


def _round_up(n, m):
    return ((n + m - 1) // m) * m


def _choose_tile(B, H):
    """Pick the batch-lane tile.

    VMEM per grid step ~= 32 B/lane (in+out, double-buffered) + ~8*H B/lane for the
    materialized (H, tb) hidden activation and its temporaries.  Budget 24 MiB keeps us
    safely under v7x's 64 MiB VMEM (32 MiB default scoped) and well under v5e/v6e.
    For large batches aim for >= 8 grid steps so v7x's 2 TensorCores both get work.
    """
    budget = 24 * 1024 * 1024
    cap = max(512, min(64 * 1024, ((budget // (32 + 8 * H)) // 512) * 512))
    target = -(-B // 8)                        # ceil(B / 8) -> >= 8 grid steps when possible
    return max(512, min(cap, _round_up(target, 512)))


def linearnet1_forward_fm(xt, w1, b1, w2, b2, *, use_mxu=True):
    """Feature-major entry point (no wrapper transposes).

    xt: (2, B); returns (2, B) softmax probabilities.
    w1: (2, H); b1: (H,) or (1, H); w2: (H, 2); b2: (2,) or (1, 2).
    """
    B = xt.shape[1]
    H = w1.shape[1]

    xt = xt.astype(jnp.float32)
    w1t = jnp.asarray(w1, jnp.float32).T                       # (H, 2)
    b1c = jnp.reshape(jnp.asarray(b1, jnp.float32), (H, 1))    # (H, 1)
    w2m = jnp.asarray(w2, jnp.float32)                         # (H, 2)
    b2v = jnp.reshape(jnp.asarray(b2, jnp.float32), (2,))

    # Precompute the head's difference weights in the wrapper (review item).
    wd = w2m[:, 0] - w2m[:, 1]                                 # (H,)
    wd = wd.reshape(1, H) if use_mxu else wd.reshape(H, 1)
    bd = jnp.reshape(b2v[0] - b2v[1], (1, 1))

    tb = _choose_tile(B, H)
    bp = _round_up(B, tb)
    xt_p = xt if bp == B else jnp.pad(xt, ((0, 0), (0, bp - B)))

    out_p = pl.pallas_call(
        functools.partial(linearnet1_kernel, use_mxu=use_mxu),
        out_shape=jax.ShapeDtypeStruct((2, bp), jnp.float32),
        grid=(bp // tb,),
        in_specs=[
            pl.BlockSpec((2, tb), lambda i: (0, i)),           # x tile (batch on lanes)
            pl.BlockSpec((H, 2), lambda i: (0, 0)),            # w1^T (resident across grid)
            pl.BlockSpec((H, 1), lambda i: (0, 0)),            # b1   (resident)
            pl.BlockSpec(wd.shape, lambda i: (0, 0)),          # wd   (resident)
            pl.BlockSpec((1, 1), lambda i: (0, 0)),            # bd   (resident)
        ],
        out_specs=pl.BlockSpec((2, tb), lambda i: (0, i)),
        compiler_params=pltpu.CompilerParams(
            dimension_semantics=("parallel",),
            vmem_limit_bytes=48 * 1024 * 1024,
        ),
    )(xt_p, w1t, b1c, wd, bd)

    return out_p[:, :B]


def linearnet1_forward(x, w1, b1, w2, b2, *, use_mxu=True):
    """Drop-in (torch-layout) wrapper: x (B, 2) -> (B, 2) probabilities.

    Does exactly one transpose each way; production callers that can hold activations
    feature-major should call linearnet1_forward_fm directly and skip them.
    """
    return linearnet1_forward_fm(x.T, w1, b1, w2, b2, use_mxu=use_mxu).T


def reference_forward(x, w1, b1, w2, b2):
    h = jnp.maximum(x @ w1 + jnp.reshape(b1, (1, -1)), 0.0)
    logits = h @ w2 + jnp.reshape(b2, (1, -1))
    return jax.nn.softmax(logits, axis=1)


if __name__ == "__main__":
    key = jax.random.PRNGKey(0)
    H = 32  # hidden num
    kx, k1, k2, k3, k4, kx2 = jax.random.split(key, 6)

    # Deterministic parameter init (uniform, torch-Linear-like scale).
    bound1 = 1.0 / (2.0 ** 0.5)
    bound2 = 1.0 / (H ** 0.5)
    w1 = jax.random.uniform(k1, (2, H), minval=-bound1, maxval=bound1, dtype=jnp.float32)
    b1 = jax.random.uniform(k2, (1, H), minval=-bound1, maxval=bound1, dtype=jnp.float32)
    w2 = jax.random.uniform(k3, (H, 2), minval=-bound2, maxval=bound2, dtype=jnp.float32)
    b2 = jax.random.uniform(k4, (1, 2), minval=-bound2, maxval=bound2, dtype=jnp.float32)

    # 1) Small batch, MXU path, torch-layout wrapper.
    B = 8
    x = jax.random.normal(kx, (B, 2), dtype=jnp.float32)
    out = linearnet1_forward(x, w1, b1, w2, b2)
    jax.block_until_ready(out)
    ref = reference_forward(x, w1, b1, w2, b2)
    assert out.shape == (B, 2)
    assert jnp.allclose(out, ref, atol=1e-5, rtol=1e-5)
    assert jnp.allclose(jnp.sum(out, axis=1), jnp.ones((B,)), atol=1e-5)

    # 2) Multi-step grid + batch padding (B not a multiple of the tile), MXU path.
    B2 = 1300
    x2 = jax.random.normal(kx2, (B2, 2), dtype=jnp.float32)
    out2 = linearnet1_forward(x2, w1, b1, w2, b2)
    jax.block_until_ready(out2)
    ref2 = reference_forward(x2, w1, b1, w2, b2)
    assert out2.shape == (B2, 2)
    assert jnp.allclose(out2, ref2, atol=1e-5, rtol=1e-5)

    # 3) Feature-major entry point (no wrapper transposes) with the VPU path (v5e option).
    out3 = linearnet1_forward_fm(x.T, w1, b1, w2, b2, use_mxu=False)
    jax.block_until_ready(out3)
    assert jnp.allclose(out3.T, ref, atol=1e-5, rtol=1e-5)

    print("KERNEL_OK")
</pallas_src>

<mosaic_0001>
module attributes {stable_mosaic.version = 11 : i64} {
  func.func @linearnet1_kernel(%arg0: i32, %arg1: memref<2x512xf32, #tpu.memory_space<vmem>>, %arg2: memref<32x2xf32, #tpu.memory_space<vmem>>, %arg3: memref<32x1xf32, #tpu.memory_space<vmem>>, %arg4: memref<1x32xf32, #tpu.memory_space<vmem>>, %arg5: memref<1x1xf32, #tpu.memory_space<vmem>>, %arg6: memref<2x512xf32, #tpu.memory_space<vmem>>) attributes {dimension_semantics = [#tpu.dimension_semantics<parallel>], iteration_bounds = array<i64: 1>, scalar_prefetch = 0 : i64, scratch_operands = 0 : i64, tpu.core_type = #tpu.core_type<tc>, window_params = [{transform_indices = @transform_0, window_bounds = array<i64: 2, 512>}, {pipeline_mode = #tpu.pipeline_mode<synchronous>, transform_indices = @transform_1, window_bounds = array<i64: 32, 2>}, {pipeline_mode = #tpu.pipeline_mode<synchronous>, transform_indices = @transform_2, window_bounds = array<i64: 32, 1>}, {pipeline_mode = #tpu.pipeline_mode<synchronous>, transform_indices = @transform_3, window_bounds = array<i64: 1, 32>}, {pipeline_mode = #tpu.pipeline_mode<synchronous>, transform_indices = @transform_4, window_bounds = array<i64: 1, 1>}, {transform_indices = @transform_5, window_bounds = array<i64: 2, 512>}]} {
    %c0 = arith.constant 0 : index
    %c0_0 = arith.constant 0 : index
    %0 = vector.load %arg1[%c0, %c0_0] : memref<2x512xf32, #tpu.memory_space<vmem>>, vector<2x512xf32>
    %c0_1 = arith.constant 0 : index
    %c0_2 = arith.constant 0 : index
    %1 = vector.load %arg2[%c0_1, %c0_2] : memref<32x2xf32, #tpu.memory_space<vmem>>, vector<32x2xf32>
    %cst = arith.constant dense<0.000000e+00> : vector<32x512xf32>
    %2 = tpu.matmul %1, %0, %cst {dimension_numbers = #tpu.dot_dimension_numbers<[1], [0], [0], [1], [0, 0, 1, 1], [], []>} : vector<32x2xf32>, vector<2x512xf32>, vector<32x512xf32> -> vector<32x512xf32>
    %c0_3 = arith.constant 0 : index
    %c0_4 = arith.constant 0 : index
    %3 = vector.load %arg3[%c0_3, %c0_4] : memref<32x1xf32, #tpu.memory_space<vmem>>, vector<32x1xf32>
    %4 = vector.broadcast %3 : vector<32x1xf32> to vector<32x512xf32>
    %5 = arith.addf %2, %4 : vector<32x512xf32>
    %cst_5 = arith.constant 0.000000e+00 : f32
    %6 = vector.broadcast %cst_5 : f32 to vector<32x512xf32>
    %7 = arith.maximumf %5, %6 : vector<32x512xf32>
    %c0_6 = arith.constant 0 : index
    %c0_7 = arith.constant 0 : index
    %8 = vector.load %arg4[%c0_6, %c0_7] : memref<1x32xf32, #tpu.memory_space<vmem>>, vector<1x32xf32>
    %cst_8 = arith.constant dense<0.000000e+00> : vector<1x512xf32>
    %9 = tpu.matmul %8, %7, %cst_8 {dimension_numbers = #tpu.dot_dimension_numbers<[1], [0], [0], [1], [0, 0, 1, 1], [], []>} : vector<1x32xf32>, vector<32x512xf32>, vector<1x512xf32> -> vector<1x512xf32>
    %c0_9 = arith.constant 0 : index
    %c0_10 = arith.constant 0 : index
    %10 = vector.load %arg5[%c0_9, %c0_10] : memref<1x1xf32, #tpu.memory_space<vmem>>, vector<1x1xf32>
    %11 = vector.broadcast %10 : vector<1x1xf32> to vector<1x512xf32>
    %12 = arith.addf %9, %11 : vector<1x512xf32>
    %cst_11 = arith.constant 0.000000e+00 : f32
    %13 = vector.broadcast %cst_11 : f32 to vector<1x512xf32>
    %14 = arith.subf %13, %12 : vector<1x512xf32>
    %15 = math.exp %14 : vector<1x512xf32>
    %cst_12 = arith.constant 1.000000e+00 : f32
    %16 = vector.broadcast %cst_12 : f32 to vector<1x512xf32>
    %17 = arith.addf %16, %15 : vector<1x512xf32>
    %18 = tpu.reciprocal %17 : vector<1x512xf32> -> vector<1x512xf32>
    %cst_13 = arith.constant 1.000000e+00 : f32
    %19 = vector.broadcast %cst_13 : f32 to vector<1x512xf32>
    %20 = arith.subf %19, %18 : vector<1x512xf32>
    %21 = tpu.concatenate %18, %20 in 0 : vector<1x512xf32>, vector<1x512xf32> -> vector<2x512xf32>
    %c0_14 = arith.constant 0 : index
    %c0_15 = arith.constant 0 : index
    %22 = vector.load %arg6[%c0_14, %c0_15] : memref<2x512xf32, #tpu.memory_space<vmem>>, vector<2x512xf32>
    tpu.vector_store %arg6[%c0_14, %c0_15], %21 {strides = array<i32>} : memref<2x512xf32, #tpu.memory_space<vmem>>, vector<2x512xf32>,
    return
  }
  func.func @transform_0(%arg0: i32) -> (i32, i32) {
    %c0_i32 = arith.constant 0 : i32
    %c0_i32_0 = arith.constant 0 : i32
    return %c0_i32, %arg0 : i32, i32
  }
  func.func @transform_1(%arg0: i32) -> (i32, i32) {
    %c0_i32 = arith.constant 0 : i32
    %c0_i32_0 = arith.constant 0 : i32
    %c0_i32_1 = arith.constant 0 : i32
    return %c0_i32, %c0_i32_0 : i32, i32
  }
  func.func @transform_2(%arg0: i32) -> (i32, i32) {
    %c0_i32 = arith.constant 0 : i32
    %c0_i32_0 = arith.constant 0 : i32
    %c0_i32_1 = arith.constant 0 : i32
    return %c0_i32, %c0_i32_0 : i32, i32
  }
  func.func @transform_3(%arg0: i32) -> (i32, i32) {
    %c0_i32 = arith.constant 0 : i32
    %c0_i32_0 = arith.constant 0 : i32
    %c0_i32_1 = arith.constant 0 : i32
    return %c0_i32, %c0_i32_0 : i32, i32
  }
  func.func @transform_4(%arg0: i32) -> (i32, i32) {
    %c0_i32 = arith.constant 0 : i32
    %c0_i32_0 = arith.constant 0 : i32
    %c0_i32_1 = arith.constant 0 : i32
    return %c0_i32, %c0_i32_0 : i32, i32
  }
  func.func @transform_5(%arg0: i32) -> (i32, i32) {
    %c0_i32 = arith.constant 0 : i32
    %c0_i32_0 = arith.constant 0 : i32
    return %c0_i32, %arg0 : i32, i32
  }
}

</mosaic_0001>

<llo_original>
// kernel: tpu_custom_call.1
$region0: #{tpu_custom_call.1}
  #allocation0 [shape = 'u32[]', space=smem, size = 0x4, offset = 0x4, fixed_abs, tag = 'smem constant byte address 0x4 - core index']
  #allocation1 [shape = 'u32[72,128]{1,0:T(1,128)}', space=vmem, size = 0x9000, scoped, tag = 'internal scratch']
  #allocation2 [shape = 'f32[1,1]{1,0:T(1,128)S(1)}', space=vmem, size = 0x200, scoped, tag = 'scoped memory for tpu_custom_call.1']
  %s0 = inlined_call_operand.vmem [shape: f32[2,512], index: 0, kind: input, shape index: {}]
  %s1 = inlined_call_operand.vmem [shape: f32[32,2], index: 1, kind: input, shape index: {}]
  %s2 = inlined_call_operand.vmem [shape: f32[32,1], index: 2, kind: input, shape index: {}]
  %s3 = inlined_call_operand.vmem [shape: f32[1,32], index: 3, kind: input, shape index: {}]
  %s4 = inlined_call_operand.<no memory space> [shape: f32[1,1], index: 4, kind: input, shape index: {}]
  %s5 = inlined_call_operand.hbm [shape: f32[2,512], index: 5, kind: output, shape index: {}]
  %s6 = sld [smem:[#allocation0]]
  $region30: #{tpu_custom_call.1} parent=0
    _
  %s8 = ssub.s32 1, %s6
  %s9 = scalar_select 0, %s8, %s6
  %v10 = vstv %s4
  %11 = vst [vmem:[#allocation2] sm:$0x1] %v10
  $region1: #{tpu_custom_call.1} parent=0
    #allocation3 [shape = 'u8[4096]{0}', space=vmem, size = 0x1000, scoped, tag = 'output window, operand 0, single buffered']
    #allocation4 [shape = 's32[1]{0}', space=sflag, size = 0x4, scoped, tag = 'scoped memory for tpu_custom_call.1']
    %12 = vsyncpa [#allocation4], 0
    // Predicated region
    $region2: #{tpu_custom_call.1} parent=1 // pred_check
      _
    $region3: #{tpu_custom_call.1} parent=1 // pred_check_branch
      %14 = sbr.rel (0) target = $region5
    $region4: #{tpu_custom_call.1} parent=1 // pred_region
      _
    $region5: #{tpu_custom_call.1} parent=1 // pred_fallthru
      _
    // Predicated region
    $region6: #{tpu_custom_call.1} parent=1 // pred_check
      _
    $region7: #{tpu_custom_call.1} parent=1 // pred_check_branch
      %16 = sbr.rel (0) target = $region9
    $region8: #{tpu_custom_call.1} parent=1 // pred_region
      _
    $region9: #{tpu_custom_call.1} parent=1 // pred_fallthru
      _
    // Predicated region
    $region10: #{tpu_custom_call.1} parent=1 // pred_check
      _
    $region11: #{tpu_custom_call.1} parent=1 // pred_check_branch
      %18 = sbr.rel (0) target = $region13
    $region12: #{tpu_custom_call.1} parent=1 // pred_region
      _
    $region13: #{tpu_custom_call.1} parent=1 // pred_fallthru
      _
    // Predicated region
    $region14: #{tpu_custom_call.1} parent=1 // pred_check
      _
    $region15: #{tpu_custom_call.1} parent=1 // pred_check_branch
      %20 = sbr.rel (0) target = $region17
    $region16: #{tpu_custom_call.1} parent=1 // pred_region
      _
    $region17: #{tpu_custom_call.1} parent=1 // pred_fallthru
      _
    // Predicated region
    $region18: #{tpu_custom_call.1} parent=1 // pred_check
      _
    $region19: #{tpu_custom_call.1} parent=1 // pred_check_branch
      %22 = sbr.rel (0) target = $region21
    $region20: #{tpu_custom_call.1} parent=1 // pred_region
      _
    $region21: #{tpu_custom_call.1} parent=1 // pred_fallthru
      _
    %v23 = vld [vmem:[%s0] sm:$0xff]
    %v24 = vld [vmem:[%s1] sm:$0xff]
    %v25 = vld [vmem:[%s1 + $0x8] sm:$0xff]
    %v26 = vld [vmem:[%s1 + $0x10] sm:$0xff]
    %v27 = vld [vmem:[%s1 + $0x18] sm:$0xff]
    %v28 = vld [vmem:[%s2] sm:$0xff]
    %v29 = vld [vmem:[%s2 + $0x8] sm:$0xff]
    %v30 = vld [vmem:[%s2 + $0x10] sm:$0xff]
    %v31 = vld [vmem:[%s2 + $0x18] sm:$0xff]
    %33 = vset.pattern.permute.xlu0 0
    %34 = vperm.xlu0 %33, %v28
    %v35 = vpop.permute.xlu0 %34
    %38 = vset.pattern.permute.xlu0 0
    %39 = vperm.xlu0 %38, %v29
    %v40 = vpop.permute.xlu0 %39
    %43 = vset.pattern.permute.xlu0 0
    %44 = vperm.xlu0 %43, %v30
    %v45 = vpop.permute.xlu0 %44
    %48 = vset.pattern.permute.xlu0 0
    %49 = vperm.xlu0 %48, %v31
    %v50 = vpop.permute.xlu0 %49
    %53 = vst [vmem:[#allocation1] ss:$4 sm:$0xff] %v23
    %v54 = vld.sshfl [vmem:[#allocation1] sm:$0xff pattern:$0x73625140]
    %v55 = vld.sshfl [vmem:[#allocation1 + $0x8] sm:$0xff pattern:$0x73625140]
    %v56 = vld.sshfl [vmem:[#allocation1 + $0x10] sm:$0xff pattern:$0x73625140]
    %v57 = vld.sshfl [vmem:[#allocation1 + $0x18] sm:$0xff pattern:$0x73625140]
    %vm58 = vcmask 15360
    %v60 = vsel %vm58, %v24, 0
    %v63 = vsel %vm58, %v25, 0
    %v66 = vsel %vm58, %v26, 0
    %v69 = vsel %vm58, %v27, 0
    %vm71 = vcmask 1041408
    %v72 = vsel %vm71, %v54, 0
    %v74 = vsel %vm71, %v55, 0
    %v76 = vsel %vm71, %v56, 0
    %v78 = vsel %vm71, %v57, 0
    %80 = vmatpush.msra.mxu0 0.0
    %81 = vmatpush.msra.mxu0 0.0
    %82 = vmatpush.msra.mxu0 0.0
    %83 = vmatpush.msra.mxu0 0.0
    %84 = vmatpush.msra.mxu0 0.0
    %85 = vmatpush.msra.mxu0 0.0
    %86 = vmatpush.msra.mxu0 0.0
    %87 = vmatpush.msra.mxu0 0.0
    %88 = vmatpush.msra.mxu0 0.0
    %89 = vmatpush.msra.mxu0 0.0
    %90 = vmatpush.msra.mxu0 0.0
    %91 = vmatpush.msra.mxu0 0.0
    %92 = vmatpush.msra.mxu0 0.0
    %93 = vmatpush.msra.mxu0 0.0
    %94 = vmatpush.msra.mxu0 0.0
    %95 = vmatpush.msra.mxu0 %v72
    %96 = vmatmul.f32.gmra.mxu0 %v60
    %v97 = vpop.f32.mrf.mxu0
    %v98 = vadd.f32 %v35, %v97
    %99 = vmatmul.f32.gmra.mxu0 %v63
    %v100 = vpop.f32.mrf.mxu0
    %v101 = vadd.f32 %v40, %v100
    %102 = vmatmul.f32.gmra.mxu0 %v66
    %v103 = vpop.f32.mrf.mxu0
    %v104 = vadd.f32 %v45, %v103
    %105 = vmatmul.f32.gmra.mxu0 %v69
    %v106 = vpop.f32.mrf.mxu0
    %v107 = vadd.f32 %v50, %v106
    %108 = vdwg.mxu0
    %109 = vmatpush.msra.mxu0 0.0
    %110 = vmatpush.msra.mxu0 0.0
    %111 = vmatpush.msra.mxu0 0.0
    %112 = vmatpush.msra.mxu0 0.0
    %113 = vmatpush.msra.mxu0 0.0
    %114 = vmatpush.msra.mxu0 0.0
    %115 = vmatpush.msra.mxu0 0.0
    %116 = vmatpush.msra.mxu0 0.0
    %117 = vmatpush.msra.mxu0 0.0
    %118 = vmatpush.msra.mxu0 0.0
    %119 = vmatpush.msra.mxu0 0.0
    %120 = vmatpush.msra.mxu0 0.0
    %121 = vmatpush.msra.mxu0 0.0
    %122 = vmatpush.msra.mxu0 0.0
    %123 = vmatpush.msra.mxu0 0.0
    %124 = vmatpush.msra.mxu0 %v74
    %125 = vmatmul.f32.gmra.mxu0 %v60
    %v126 = vpop.f32.mrf.mxu0
    %v127 = vadd.f32 %v35, %v126
    %128 = vmatmul.f32.gmra.mxu0 %v63
    %v129 = vpop.f32.mrf.mxu0
    %v130 = vadd.f32 %v40, %v129
    %131 = vmatmul.f32.gmra.mxu0 %v66
    %v132 = vpop.f32.mrf.mxu0
    %v133 = vadd.f32 %v45, %v132
    %134 = vmatmul.f32.gmra.mxu0 %v69
    %v135 = vpop.f32.mrf.mxu0
    %v136 = vadd.f32 %v50, %v135
    %137 = vdwg.mxu0
    %138 = vmatpush.msra.mxu0 0.0
    %139 = vmatpush.msra.mxu0 0.0
    %140 = vmatpush.msra.mxu0 0.0
    %141 = vmatpush.msra.mxu0 0.0
    %142 = vmatpush.msra.mxu0 0.0
    %143 = vmatpush.msra.mxu0 0.0
    %144 = vmatpush.msra.mxu0 0.0
    %145 = vmatpush.msra.mxu0 0.0
    %146 = vmatpush.msra.mxu0 0.0
    %147 = vmatpush.msra.mxu0 0.0
    %148 = vmatpush.msra.mxu0 0.0
    %149 = vmatpush.msra.mxu0 0.0
    %150 = vmatpush.msra.mxu0 0.0
    %151 = vmatpush.msra.mxu0 0.0
    %152 = vmatpush.msra.mxu0 0.0
    %153 = vmatpush.msra.mxu0 %v76
    %154 = vmatmul.f32.gmra.mxu0 %v60
    %v155 = vpop.f32.mrf.mxu0
    %v156 = vadd.f32 %v35, %v155
    %157 = vmatmul.f32.gmra.mxu0 %v63
    %v158 = vpop.f32.mrf.mxu0
    %v159 = vadd.f32 %v40, %v158
    %160 = vmatmul.f32.gmra.mxu0 %v66
    %v161 = vpop.f32.mrf.mxu0
    %v162 = vadd.f32 %v45, %v161
    %163 = vmatmul.f32.gmra.mxu0 %v69
    %v164 = vpop.f32.mrf.mxu0
    %v165 = vadd.f32 %v50, %v164
    %166 = vdwg.mxu0
    %167 = vmatpush.msra.mxu0 0.0
    %168 = vmatpush.msra.mxu0 0.0
    %169 = vmatpush.msra.mxu0 0.0
    %170 = vmatpush.msra.mxu0 0.0
    %171 = vmatpush.msra.mxu0 0.0
    %172 = vmatpush.msra.mxu0 0.0
    %173 = vmatpush.msra.mxu0 0.0
    %174 = vmatpush.msra.mxu0 0.0
    %175 = vmatpush.msra.mxu0 0.0
    %176 = vmatpush.msra.mxu0 0.0
    %177 = vmatpush.msra.mxu0 0.0
    %178 = vmatpush.msra.mxu0 0.0
    %179 = vmatpush.msra.mxu0 0.0
    %180 = vmatpush.msra.mxu0 0.0
    %181 = vmatpush.msra.mxu0 0.0
    %182 = vmatpush.msra.mxu0 %v78
    %183 = vmatmul.f32.gmra.mxu0 %v60
    %v184 = vpop.f32.mrf.mxu0
    %v185 = vadd.f32 %v35, %v184
    %186 = vmatmul.f32.gmra.mxu0 %v63
    %v187 = vpop.f32.mrf.mxu0
    %v188 = vadd.f32 %v40, %v187
    %189 = vmatmul.f32.gmra.mxu0 %v66
    %v190 = vpop.f32.mrf.mxu0
    %v191 = vadd.f32 %v45, %v190
    %192 = vmatmul.f32.gmra.mxu0 %v69
    %v193 = vpop.f32.mrf.mxu0
    %v194 = vadd.f32 %v50, %v193
    %195 = vdwg.mxu0
    %v196 = vmax.f32 %v98, 0.0
    %v197 = vmax.f32 %v127, 0.0
    %v198 = vmax.f32 %v156, 0.0
    %v199 = vmax.f32 %v185, 0.0
    %v200 = vmax.f32 %v101, 0.0
    %v201 = vmax.f32 %v130, 0.0
    %v202 = vmax.f32 %v159, 0.0
    %v203 = vmax.f32 %v188, 0.0
    %v204 = vmax.f32 %v104, 0.0
    %v205 = vmax.f32 %v133, 0.0
    %v206 = vmax.f32 %v162, 0.0
    %v207 = vmax.f32 %v191, 0.0
    %v208 = vmax.f32 %v107, 0.0
    %v209 = vmax.f32 %v136, 0.0
    %v210 = vmax.f32 %v165, 0.0
    %v211 = vmax.f32 %v194, 0.0
    %v212 = vld [vmem:[%s3] sm:$0x1]
    %v213 = vld [vmem:[#allocation2] sm:$0x1]
    %215 = vset.pattern.permute.xlu0 0
    %216 = vperm.xlu0 %215, %v213
    %v217 = vpop.permute.xlu0 %216
    %v219 = vperm.slane %v217, 0
    %vm220 = vcmask 261120
    %v222 = vsel %vm220, %v212, 0
    %224 = vmatpush.msra.mxu0 0.0
    %225 = vmatpush.msra.mxu0 0.0
    %226 = vmatpush.msra.mxu0 0.0
    %227 = vmatpush.msra.mxu0 0.0
    %228 = vmatpush.msra.mxu0 0.0
    %229 = vmatpush.msra.mxu0 0.0
    %230 = vmatpush.msra.mxu0 0.0
    %231 = vmatpush.msra.mxu0 0.0
    %232 = vmatpush.msra.mxu0 0.0
    %233 = vmatpush.msra.mxu0 0.0
    %234 = vmatpush.msra.mxu0 0.0
    %235 = vmatpush.msra.mxu0 0.0
    %236 = vmatpush.msra.mxu0 %v208
    %237 = vmatpush.msra.mxu0 %v204
    %238 = vmatpush.msra.mxu0 %v200
    %239 = vmatpush.msra.mxu0 %v196
    %240 = vmatmul.f32.gmra.mxu0 %v222
    %v241 = vpop.f32.mrf.mxu0
    %v242 = vadd.f32 %v219, %v241
    %243 = vdwg.mxu0
    %244 = vmatpush.msra.mxu0 0.0
    %245 = vmatpush.msra.mxu0 0.0
    %246 = vmatpush.msra.mxu0 0.0
    %247 = vmatpush.msra.mxu0 0.0
    %248 = vmatpush.msra.mxu0 0.0
    %249 = vmatpush.msra.mxu0 0.0
    %250 = vmatpush.msra.mxu0 0.0
    %251 = vmatpush.msra.mxu0 0.0
    %252 = vmatpush.msra.mxu0 0.0
    %253 = vmatpush.msra.mxu0 0.0
    %254 = vmatpush.msra.mxu0 0.0
    %255 = vmatpush.msra.mxu0 0.0
    %256 = vmatpush.msra.mxu0 %v209
    %257 = vmatpush.msra.mxu0 %v205
    %258 = vmatpush.msra.mxu0 %v201
    %259 = vmatpush.msra.mxu0 %v197
    %260 = vmatmul.f32.gmra.mxu0 %v222
    %v261 = vpop.f32.mrf.mxu0
    %v262 = vadd.f32 %v219, %v261
    %263 = vdwg.mxu0
    %264 = vmatpush.msra.mxu0 0.0
    %265 = vmatpush.msra.mxu0 0.0
    %266 = vmatpush.msra.mxu0 0.0
    %267 = vmatpush.msra.mxu0 0.0
    %268 = vmatpush.msra.mxu0 0.0
    %269 = vmatpush.msra.mxu0 0.0
    %270 = vmatpush.msra.mxu0 0.0
    %271 = vmatpush.msra.mxu0 0.0
    %272 = vmatpush.msra.mxu0 0.0
    %273 = vmatpush.msra.mxu0 0.0
    %274 = vmatpush.msra.mxu0 0.0
    %275 = vmatpush.msra.mxu0 0.0
    %276 = vmatpush.msra.mxu0 %v210
    %277 = vmatpush.msra.mxu0 %v206
    %278 = vmatpush.msra.mxu0 %v202
    %279 = vmatpush.msra.mxu0 %v198
    %280 = vmatmul.f32.gmra.mxu0 %v222
    %v281 = vpop.f32.mrf.mxu0
    %v282 = vadd.f32 %v219, %v281
    %283 = vdwg.mxu0
    %284 = vmatpush.msra.mxu0 0.0
    %285 = vmatpush.msra.mxu0 0.0
    %286 = vmatpush.msra.mxu0 0.0
    %287 = vmatpush.msra.mxu0 0.0
    %288 = vmatpush.msra.mxu0 0.0
    %289 = vmatpush.msra.mxu0 0.0
    %290 = vmatpush.msra.mxu0 0.0
    %291 = vmatpush.msra.mxu0 0.0
    %292 = vmatpush.msra.mxu0 0.0
    %293 = vmatpush.msra.mxu0 0.0
    %294 = vmatpush.msra.mxu0 0.0
    %295 = vmatpush.msra.mxu0 0.0
    %296 = vmatpush.msra.mxu0 %v211
    %297 = vmatpush.msra.mxu0 %v207
    %298 = vmatpush.msra.mxu0 %v203
    %299 = vmatpush.msra.mxu0 %v199
    %300 = vmatmul.f32.gmra.mxu0 %v222
    %v301 = vpop.f32.mrf.mxu0
    %v302 = vadd.f32 %v219, %v301
    %303 = vdwg.mxu0
    %v304 = vsub.f32 0.0, %v242
    %v305 = vsub.f32 0.0, %v262
    %v306 = vsub.f32 0.0, %v282
    %v307 = vsub.f32 0.0, %v302
    %v308 = vmul.f32 %v304, 1.442695
    %v309 = vpow.pop %v308
    %v310 = vmul.f32 %v305, 1.442695
    %v311 = vpow.pop %v310
    %v312 = vmul.f32 %v306, 1.442695
    %v313 = vpow.pop %v312
    %v314 = vmul.f32 %v307, 1.442695
    %v315 = vpow.pop %v314
    %v316 = vadd.f32 %v309, 1.0
    %v317 = vadd.f32 %v311, 1.0
    %v318 = vadd.f32 %v313, 1.0
    %v319 = vadd.f32 %v315, 1.0
    %v320 = vrcp.pop %v316
    %v321 = vmul.f32 %v316, %v320
    %v322 = vsub.f32 1.0, %v321
    %v323 = vmul.f32 %v320, %v322
    %v324 = vadd.f32 %v320, %v323
    %vm325 = vweird.f32 %v316
    %vm326 = vweird.f32 %v320
    %vm327 = vmor %vm325, %vm326
    %v328 = vsel %vm327, %v320, %v324
    %v329 = vand.u32 2147483647, %v316
    %vm330 = vcmp.eq.f32.partialorder %v329, 8.507059e+37
    %v331 = vand.u32 %v316, 2147483648
    %v332 = vor.u32 1.1754944e-38, %v331
    %v333 = vsel %vm330, %v332, %v328
    %v334 = vrcp.pop %v317
    %v335 = vmul.f32 %v317, %v334
    %v336 = vsub.f32 1.0, %v335
    %v337 = vmul.f32 %v334, %v336
    %v338 = vadd.f32 %v334, %v337
    %vm339 = vweird.f32 %v317
    %vm340 = vweird.f32 %v334
    %vm341 = vmor %vm339, %vm340
    %v342 = vsel %vm341, %v334, %v338
    %v343 = vand.u32 2147483647, %v317
    %vm344 = vcmp.eq.f32.partialorder %v343, 8.507059e+37
    %v345 = vand.u32 %v317, 2147483648
    %v346 = vor.u32 1.1754944e-38, %v345
    %v347 = vsel %vm344, %v346, %v342
    %v348 = vrcp.pop %v318
    %v349 = vmul.f32 %v318, %v348
    %v350 = vsub.f32 1.0, %v349
    %v351 = vmul.f32 %v348, %v350
    %v352 = vadd.f32 %v348, %v351
    %vm353 = vweird.f32 %v318
    %vm354 = vweird.f32 %v348
    %vm355 = vmor %vm353, %vm354
    %v356 = vsel %vm355, %v348, %v352
    %v357 = vand.u32 2147483647, %v318
    %vm358 = vcmp.eq.f32.partialorder %v357, 8.507059e+37
    %v359 = vand.u32 %v318, 2147483648
    %v360 = vor.u32 1.1754944e-38, %v359
    %v361 = vsel %vm358, %v360, %v356
    %v362 = vrcp.pop %v319
    %v363 = vmul.f32 %v319, %v362
    %v364 = vsub.f32 1.0, %v363
    %v365 = vmul.f32 %v362, %v364
    %v366 = vadd.f32 %v362, %v365
    %vm367 = vweird.f32 %v319
    %vm368 = vweird.f32 %v362
    %vm369 = vmor %vm367, %vm368
    %v370 = vsel %vm369, %v362, %v366
    %v371 = vand.u32 2147483647, %v319
    %vm372 = vcmp.eq.f32.partialorder %v371, 8.507059e+37
    %v373 = vand.u32 %v319, 2147483648
    %v374 = vor.u32 1.1754944e-38, %v373
    %v375 = vsel %vm372, %v374, %v370
    %v376 = vsub.f32 1.0, %v333
    %v377 = vsub.f32 1.0, %v347
    %v378 = vsub.f32 1.0, %v361
    %v379 = vsub.f32 1.0, %v375
    %v384 = vrot.slane %v376, 7
    %v385 = vrot.slane %v377, 7
    %v386 = vrot.slane %v378, 7
    %v387 = vrot.slane %v379, 7
    %vm392 = vcmask 1040384
    %v393 = vsel %vm392, %v333, %v384
    %v394 = vsel %vm392, %v347, %v385
    %v395 = vsel %vm392, %v361, %v386
    %v396 = vsel %vm392, %v375, %v387
    %v401 = vrot.slane %v394, 6
    %v402 = vrot.slane %v395, 4
    %v403 = vrot.slane %v396, 2
    %v404 = vsel %vm71, %v393, %v401
    %vm405 = vcmask 1045508
    %v406 = vsel %vm405, %v402, %v403
    %vm407 = vcmask 1043456
    %v408 = vsel %vm407, %v404, %v406
    %410 = vst [vmem:[#allocation3] sm:$0xff] %v408
    // Predicated region
    $region22: #{tpu_custom_call.1} parent=1 // pred_check
      _
    $region23: #{tpu_custom_call.1} parent=1 // pred_check_branch
      %412 = sbr.rel (0) target = $region25
    $region24: #{tpu_custom_call.1} parent=1 // pred_region
      %414 = vsyncadd [#allocation4], 0
      %s416 = sshll.u32 [#allocation3], 4
      %s417 = int_to_ptr.vmem [resolvable:$true] %s416
      %s418 = sshll.u32 %s5, 4
      %s419 = int_to_ptr.hbm [resolvable:$true] %s418
      %421 = dma.vmem_to_hbm [thread:$0]  %s417, 128, %s419, [#allocation4]
    $region25: #{tpu_custom_call.1} parent=1 // pred_fallthru
      _
    // Predicated region
    $region26: #{tpu_custom_call.1} parent=1 // pred_check
      _
    $region27: #{tpu_custom_call.1} parent=1 // pred_check_branch
      %423 = sbr.rel (0) target = $region29
    $region28: #{tpu_custom_call.1} parent=1 // pred_region
      %425 = dma.done [#allocation4], 128
    $region29: #{tpu_custom_call.1} parent=1 // pred_fallthru
      _
    %426 = vsyncpa [#allocation4], 1

</llo_original>
